<compile_context>
chip_gen: v7x
topology: tpu7x:2x2x1
jax: 0.10.0
libtpu: 0.0.40
codegen_flags: <defaults>
</compile_context>

<pallas_src>
import jax
import jax.numpy as jnp
from jax.experimental import pallas as pl
from jax.experimental.pallas import tpu as pltpu


# --------------------------------------------------------------------------- #
# VMEM limit per generation (v5e/v6e: 128 MiB physical, v7x: 64 MiB).
# --------------------------------------------------------------------------- #
def _vmem_limit_bytes():
    try:
        cap = pltpu.get_tpu_info().vmem_capacity_bytes
    except Exception:
        cap = 64 * 1024 * 1024  # conservative (v7x) fallback
    # leave ~25% headroom for compiler scratch, never ask for more than 100 MiB
    return int(min(cap * 3 // 4, 100 * 1024 * 1024))


# --------------------------------------------------------------------------- #
# Kernel 1: vision patch-embed + Q-Former cross-attention + output projection.
# One-shot (grid=(1,)), whole (small) batch folded into the MXU M dimension.
# --------------------------------------------------------------------------- #
def blip2_ctx_kernel(
    xp_ref,    # (B*P, Dp_pad) bf16  pre-flattened, lane-padded patches
    wpe_ref,   # (Dp_pad, H)   bf16  patch-embedding weight (rows zero-padded)
    bpe_ref,   # (1, H)        bf16  patch-embedding bias
    q_ref,     # (Nq, H)       bf16  pre-projected, pre-scaled Q-Former queries
    wkv_ref,   # (H, 2H)       bf16  fused [W_k | W_v]
    wo_ref,    # (H, H)        bf16
    ctx_ref,   # out: (B*Nq, H) bf16
):
    Nq, H = q_ref.shape
    B = ctx_ref.shape[0] // Nq
    P = xp_ref.shape[0] // B

    # 1) patch embedding: batch folded into M (M = B*P).
    feat = jnp.dot(xp_ref[...], wpe_ref[...], preferred_element_type=jnp.float32)
    feat = feat + bpe_ref[...].astype(jnp.float32)                     # (B*P, H)
    feat_bf = feat.astype(jnp.bfloat16)

    # 2) fused K|V projection: one lane-dense matmul with N = 2H.
    kv = jnp.dot(feat_bf, wkv_ref[...], preferred_element_type=jnp.float32)
    kv = kv.reshape(B, P, 2 * H)                                       # sublane-dim split only
    k = kv[:, :, :H].astype(jnp.bfloat16)                              # (B, P, H)
    v = kv[:, :, H:].astype(jnp.bfloat16)                              # (B, P, H)

    # Cross attention (scale already folded into q in the wrapper).
    q_b = jnp.broadcast_to(q_ref[...], (B, Nq, H))
    s = jnp.einsum("bnh,bph->bnp", q_b, k,
                   preferred_element_type=jnp.float32)                 # (B, Nq, P)
    s = s - jnp.max(s, axis=-1, keepdims=True)
    p_un = jnp.exp(s)
    attn = (p_un / jnp.sum(p_un, axis=-1, keepdims=True)).astype(jnp.bfloat16)

    ctx = jnp.einsum("bnp,bph->bnh", attn, v,
                     preferred_element_type=jnp.float32)               # (B, Nq, H)
    ctx = jnp.dot(ctx.astype(jnp.bfloat16).reshape(B * Nq, H), wo_ref[...],
                  preferred_element_type=jnp.float32)                  # (B*Nq, H)
    ctx_ref[...] = ctx.astype(jnp.bfloat16)


# --------------------------------------------------------------------------- #
# Kernel 2a: LM head, full-logits variant. Pure streaming matmul over vocab
# tiles; no cross-step state -> vocab axis can be "parallel" (v7x megacore).
# --------------------------------------------------------------------------- #
def blip2_lm_logits_kernel(ctx_ref, wlm_ref, logits_ref):
    logits_ref[...] = jnp.dot(ctx_ref[...], wlm_ref[...],
                              preferred_element_type=jnp.float32
                              ).astype(logits_ref.dtype)


# --------------------------------------------------------------------------- #
# Kernel 2b: LM head, fused greedy argmax variant. No logits writeback: keep a
# running max in VMEM scratch and the running argmax index in the resident
# tokens output across (sequential) vocab tiles.
# --------------------------------------------------------------------------- #
def blip2_lm_argmax_kernel(ctx_ref, wlm_ref, tok_ref, m_sc):
    j = pl.program_id(0)
    Vt = wlm_ref.shape[1]

    @pl.when(j == 0)
    def _():
        m_sc[...] = jnp.full_like(m_sc, -jnp.inf)
        tok_ref[...] = jnp.zeros_like(tok_ref)

    logits = jnp.dot(ctx_ref[...], wlm_ref[...],
                     preferred_element_type=jnp.float32)               # (M, Vt) f32

    tile_max = jnp.max(logits, axis=-1, keepdims=True)                 # (M, 1)
    # first-occurrence argmax within the tile (iota + min over maxima)
    idx = jax.lax.broadcasted_iota(jnp.int32, logits.shape, dimension=1)
    tile_arg = jnp.min(jnp.where(logits == tile_max, idx, jnp.int32(Vt)),
                       axis=-1, keepdims=True) + j * Vt                # (M, 1) global idx

    better = tile_max > m_sc[...]                                      # strict: keep earliest tile on ties
    m_sc[...] = jnp.where(better, tile_max, m_sc[...])
    tok_ref[...] = jnp.where(better, tile_arg, tok_ref[...])


# --------------------------------- wrapper ----------------------------------- #
def blip2_vqa_vocabulary(images_nchw, params, *, v_tile=1024, return_logits=True):
    """images_nchw: [B, C, H, W] float32.

    Returns (logits [B, Nq, V] bf16 or None, tokens [B, Nq] int32).
    With return_logits=False the greedy pick is fused into the LM-head kernel
    and no logits are ever written back to HBM.
    """
    B, C, Himg, Wimg = images_nchw.shape
    p = params["patch"]
    P = (Himg // p) * (Wimg // p)
    Dp = C * p * p
    H = params["w_pe"].shape[1]
    Nq = params["q_tok"].shape[0]
    V = params["w_lm"].shape[1]
    Vt = min(v_tile, V)
    assert V % Vt == 0 and Vt % 128 == 0
    BNq = B * Nq
    bf16 = jnp.bfloat16
    vmem_limit = _vmem_limit_bytes()

    # im2col glue (plain JAX): NCHW -> [B*P, Dp], identical to a
    # Conv2d(kernel=stride=patch) patch embedding.  Pre-flattened + lane-padded
    # so no in-kernel reshape / ragged K dim around the patch-embed matmul.
    x = images_nchw.reshape(B, C, Himg // p, p, Wimg // p, p)
    x = x.transpose(0, 2, 4, 1, 3, 5).reshape(B * P, Dp)
    Dp_pad = ((Dp + 127) // 128) * 128
    w_pe = params["w_pe"]
    if Dp_pad != Dp:
        x = jnp.pad(x, ((0, 0), (0, Dp_pad - Dp)))
        w_pe = jnp.pad(w_pe, ((0, Dp_pad - Dp), (0, 0)))

    xb = x.astype(bf16)
    w_pe = w_pe.astype(bf16)
    b_pe = params["b_pe"].astype(bf16)
    # q is batch-independent and the 1/sqrt(H) scale fuses into its projection.
    q = ((params["q_tok"] @ params["w_q"]) * (H ** -0.5)).astype(bf16)
    # fuse K and V projection weights into one lane-dense matmul.
    w_kv = jnp.concatenate([params["w_k"], params["w_v"]], axis=1).astype(bf16)
    w_o = params["w_o"].astype(bf16)
    w_lm = params["w_lm"].astype(bf16)

    # ---- stage 1: context (vision + Q-Former cross-attention) --------------- #
    # TODO(synk): for large B, tile the batch here (parallel grid axis) instead
    #             of folding it all into one block.
    full2d = lambda a: pl.BlockSpec(a.shape, lambda i: (0, 0))
    ctx = pl.pallas_call(
        blip2_ctx_kernel,
        out_shape=jax.ShapeDtypeStruct((BNq, H), bf16),
        grid_spec=pltpu.PrefetchScalarGridSpec(
            num_scalar_prefetch=0,
            grid=(1,),
            in_specs=[full2d(xb), full2d(w_pe), full2d(b_pe),
                      full2d(q), full2d(w_kv), full2d(w_o)],
            out_specs=pl.BlockSpec((BNq, H), lambda i: (0, 0)),
        ),
        compiler_params=pltpu.CompilerParams(
            dimension_semantics=("arbitrary",),
            vmem_limit_bytes=vmem_limit,
        ),
    )(xb, w_pe, b_pe, q, w_kv, w_o)

    # ---- stage 2: LM head, tiled over the vocab axis ------------------------ #
    grid = (V // Vt,)
    ctx_spec = pl.BlockSpec((BNq, H), lambda j: (0, 0))     # constant-index block
    wlm_spec = pl.BlockSpec((H, Vt), lambda j: (0, j))      # streamed vocab tile

    if return_logits:
        # bf16, 2-D lane-dense logits; vocab axis "parallel" (v7x both cores).
        logits2d = pl.pallas_call(
            blip2_lm_logits_kernel,
            out_shape=jax.ShapeDtypeStruct((BNq, V), bf16),
            grid_spec=pltpu.PrefetchScalarGridSpec(
                num_scalar_prefetch=0,
                grid=grid,
                in_specs=[ctx_spec, wlm_spec],
                out_specs=pl.BlockSpec((BNq, Vt), lambda j: (0, j)),
            ),
            compiler_params=pltpu.CompilerParams(
                dimension_semantics=("parallel",),
                vmem_limit_bytes=vmem_limit,
            ),
        )(ctx, w_lm)
        logits = logits2d.reshape(B, Nq, V)
        tokens = jnp.argmax(logits, axis=-1).astype(jnp.int32)
        return logits, tokens

    # Fused greedy pick: no logits writeback at all.  Vocab axis must stay
    # sequential ("arbitrary") for the running max/argmax carried across tiles.
    tok2d = pl.pallas_call(
        blip2_lm_argmax_kernel,
        out_shape=jax.ShapeDtypeStruct((BNq, 1), jnp.int32),
        grid_spec=pltpu.PrefetchScalarGridSpec(
            num_scalar_prefetch=0,
            grid=grid,
            in_specs=[ctx_spec, wlm_spec],
            out_specs=pl.BlockSpec((BNq, 1), lambda j: (0, 0)),
            scratch_shapes=[pltpu.VMEM((BNq, 1), jnp.float32)],
        ),
        compiler_params=pltpu.CompilerParams(
            dimension_semantics=("arbitrary",),
            vmem_limit_bytes=vmem_limit,
        ),
    )(ctx, w_lm)
    tokens = tok2d.reshape(B, Nq)
    return None, tokens


# --------------------------- plain-JAX reference ------------------------------ #
def reference(images_nchw, params):
    """Mirrors the kernel's bf16-operand / f32-accumulate precision choices."""
    B, C, Himg, Wimg = images_nchw.shape
    p = params["patch"]
    P = (Himg // p) * (Wimg // p)
    Dp = C * p * p
    H = params["w_pe"].shape[1]

    x = images_nchw.reshape(B, C, Himg // p, p, Wimg // p, p)
    x = x.transpose(0, 2, 4, 1, 3, 5).reshape(B, P, Dp)

    bf, f32 = jnp.bfloat16, jnp.float32
    rq = lambda a: a.astype(bf).astype(f32)   # round to bf16, compute in f32

    xb = rq(x)
    w_pe = rq(params["w_pe"])
    b_pe = rq(params["b_pe"])
    q = rq((params["q_tok"] @ params["w_q"]) * (H ** -0.5))
    w_kv = rq(jnp.concatenate([params["w_k"], params["w_v"]], axis=1))
    w_o = rq(params["w_o"])
    w_lm = rq(params["w_lm"])

    feat = jnp.einsum("bpd,dh->bph", xb, w_pe) + b_pe
    feat = rq(feat)
    kv = jnp.einsum("bph,hk->bpk", feat, w_kv)
    k = rq(kv[..., :H])
    v = rq(kv[..., H:])
    s = jnp.einsum("nh,bph->bnp", q, k)
    s = s - jnp.max(s, axis=-1, keepdims=True)
    p_un = jnp.exp(s)
    attn = rq(p_un / jnp.sum(p_un, axis=-1, keepdims=True))
    ctx = jnp.einsum("bnp,bph->bnh", attn, v)
    ctx = jnp.einsum("bnh,hk->bnk", rq(ctx), w_o)
    logits = jnp.einsum("bnh,hv->bnv", rq(ctx), w_lm)
    tokens = jnp.argmax(logits, axis=-1).astype(jnp.int32)
    return logits, tokens


# --------------------------------- main --------------------------------------- #
if __name__ == "__main__":
    key = jax.random.PRNGKey(0)
    B, C, Himg, Wimg = 2, 3, 16, 16     # small stand-in for BLIP-2 pixel_values
    patch = 4
    P = (Himg // patch) * (Wimg // patch)   # 16 patches
    Dp = C * patch * patch                  # 48 (padded to 128 in the wrapper)
    Hd = 32                                 # hidden
    Nq = 8                                  # Q-Former query tokens
    V = 512                                 # toy vocabulary size

    ks = jax.random.split(key, 10)
    params = {
        "patch": patch,
        "w_pe":  (jax.random.normal(ks[0], (Dp, Hd), jnp.float32) * 0.05),
        "b_pe":  (jax.random.normal(ks[1], (1, Hd), jnp.float32) * 0.01),
        "q_tok": (jax.random.normal(ks[2], (Nq, Hd), jnp.float32) * 0.05),
        "w_q":   (jax.random.normal(ks[3], (Hd, Hd), jnp.float32) * 0.05),
        "w_k":   (jax.random.normal(ks[4], (Hd, Hd), jnp.float32) * 0.05),
        "w_v":   (jax.random.normal(ks[5], (Hd, Hd), jnp.float32) * 0.05),
        "w_o":   (jax.random.normal(ks[6], (Hd, Hd), jnp.float32) * 0.05),
        "w_lm":  (jax.random.normal(ks[7], (Hd, V), jnp.float32) * 0.05),
    }
    images = jax.random.normal(ks[8], (B, C, Himg, Wimg), jnp.float32)

    # Path A: full (bf16) logits + wrapper argmax, vocab axis parallel.
    logits, tokens = blip2_vqa_vocabulary(images, params, return_logits=True)
    jax.block_until_ready((logits, tokens))

    # Path B: fused greedy argmax in-kernel, no logits writeback.
    _, tokens_fused = blip2_vqa_vocabulary(images, params, return_logits=False)
    jax.block_until_ready(tokens_fused)

    ref_logits, ref_tokens = reference(images, params)

    assert jnp.allclose(logits.astype(jnp.float32), ref_logits,
                        atol=1e-3, rtol=2e-2), (
        float(jnp.max(jnp.abs(logits.astype(jnp.float32) - ref_logits))))

    # Greedy picks must be (near-)argmaxes of the reference logits
    # (ties within float noise are accepted rather than demanding bit-equality).
    ref_max = jnp.max(ref_logits, axis=-1)
    picked_a = jnp.take_along_axis(ref_logits, tokens[..., None], axis=-1)[..., 0]
    picked_b = jnp.take_along_axis(ref_logits, tokens_fused[..., None], axis=-1)[..., 0]
    assert bool(jnp.all(picked_a >= ref_max - 1e-3))
    assert bool(jnp.all(picked_b >= ref_max - 1e-3))

    print("KERNEL_OK")
</pallas_src>

<mosaic_0001>
module attributes {stable_mosaic.version = 11 : i64} {
  func.func @blip2_ctx_kernel(%arg0: i32, %arg1: memref<32x128xbf16, #tpu.memory_space<vmem>>, %arg2: memref<128x32xbf16, #tpu.memory_space<vmem>>, %arg3: memref<1x32xbf16, #tpu.memory_space<vmem>>, %arg4: memref<8x32xbf16, #tpu.memory_space<vmem>>, %arg5: memref<32x64xbf16, #tpu.memory_space<vmem>>, %arg6: memref<32x32xbf16, #tpu.memory_space<vmem>>, %arg7: memref<16x32xbf16, #tpu.memory_space<vmem>>) attributes {dimension_semantics = [#tpu.dimension_semantics<arbitrary>], iteration_bounds = array<i64: 1>, scalar_prefetch = 0 : i64, scratch_operands = 0 : i64, tpu.core_type = #tpu.core_type<tc>, window_params = [{pipeline_mode = #tpu.pipeline_mode<synchronous>, transform_indices = @transform_0, window_bounds = array<i64: 32, 128>}, {pipeline_mode = #tpu.pipeline_mode<synchronous>, transform_indices = @transform_1, window_bounds = array<i64: 128, 32>}, {pipeline_mode = #tpu.pipeline_mode<synchronous>, transform_indices = @transform_2, window_bounds = array<i64: 1, 32>}, {pipeline_mode = #tpu.pipeline_mode<synchronous>, transform_indices = @transform_3, window_bounds = array<i64: 8, 32>}, {pipeline_mode = #tpu.pipeline_mode<synchronous>, transform_indices = @transform_4, window_bounds = array<i64: 32, 64>}, {pipeline_mode = #tpu.pipeline_mode<synchronous>, transform_indices = @transform_5, window_bounds = array<i64: 32, 32>}, {pipeline_mode = #tpu.pipeline_mode<synchronous>, transform_indices = @transform_6, window_bounds = array<i64: 16, 32>}]} {
    %c0 = arith.constant 0 : index
    %c0_0 = arith.constant 0 : index
    %0 = vector.load %arg1[%c0, %c0_0] : memref<32x128xbf16, #tpu.memory_space<vmem>>, vector<32x128xbf16>
    %c0_1 = arith.constant 0 : index
    %c0_2 = arith.constant 0 : index
    %1 = vector.load %arg2[%c0_1, %c0_2] : memref<128x32xbf16, #tpu.memory_space<vmem>>, vector<128x32xbf16>
    %cst = arith.constant dense<0.000000e+00> : vector<32x32xf32>
    %2 = tpu.matmul %0, %1, %cst {dimension_numbers = #tpu.dot_dimension_numbers<[1], [0], [0], [1], [0, 0, 1, 1], [], []>} : vector<32x128xbf16>, vector<128x32xbf16>, vector<32x32xf32> -> vector<32x32xf32>
    %c0_3 = arith.constant 0 : index
    %c0_4 = arith.constant 0 : index
    %3 = vector.load %arg3[%c0_3, %c0_4] : memref<1x32xbf16, #tpu.memory_space<vmem>>, vector<1x32xbf16>
    %4 = arith.extf %3 : vector<1x32xbf16> to vector<1x32xf32>
    %5 = vector.broadcast %4 : vector<1x32xf32> to vector<32x32xf32>
    %6 = arith.addf %2, %5 : vector<32x32xf32>
    %7 = arith.truncf %6 : vector<32x32xf32> to vector<32x32xbf16>
    %c0_5 = arith.constant 0 : index
    %c0_6 = arith.constant 0 : index
    %8 = vector.load %arg5[%c0_5, %c0_6] : memref<32x64xbf16, #tpu.memory_space<vmem>>, vector<32x64xbf16>
    %cst_7 = arith.constant dense<0.000000e+00> : vector<32x64xf32>
    %9 = tpu.matmul %7, %8, %cst_7 {dimension_numbers = #tpu.dot_dimension_numbers<[1], [0], [0], [1], [0, 0, 1, 1], [], []>} : vector<32x32xbf16>, vector<32x64xbf16>, vector<32x64xf32> -> vector<32x64xf32>
    %10 = vector.shape_cast %9 : vector<32x64xf32> to vector<2x16x64xf32>
    %11 = vector.extract_strided_slice %10 {offsets = [0, 0, 0], sizes = [2, 16, 32], strides = [1, 1, 1]} : vector<2x16x64xf32> to vector<2x16x32xf32>
    %12 = arith.truncf %11 : vector<2x16x32xf32> to vector<2x16x32xbf16>
    %13 = vector.extract_strided_slice %10 {offsets = [0, 0, 32], sizes = [2, 16, 32], strides = [1, 1, 1]} : vector<2x16x64xf32> to vector<2x16x32xf32>
    %14 = arith.truncf %13 : vector<2x16x32xf32> to vector<2x16x32xbf16>
    %c0_8 = arith.constant 0 : index
    %c0_9 = arith.constant 0 : index
    %15 = vector.load %arg4[%c0_8, %c0_9] : memref<8x32xbf16, #tpu.memory_space<vmem>>, vector<8x32xbf16>
    %16 = vector.shape_cast %15 : vector<8x32xbf16> to vector<1x8x32xbf16>
    %17 = vector.broadcast %16 : vector<1x8x32xbf16> to vector<2x8x32xbf16>
    "tpu.trace_start"() <{level = 10 : i32, message = "bnh,bph->bnp"}> : () -> ()
    %cst_10 = arith.constant dense<0.000000e+00> : vector<2x8x16xf32>
    %18 = tpu.matmul %17, %12, %cst_10 {dimension_numbers = #tpu.dot_dimension_numbers<[2], [2], [1], [1], [0, 0, 0, 1, 1, 1], [0], [0]>} : vector<2x8x32xbf16>, vector<2x16x32xbf16>, vector<2x8x16xf32> -> vector<2x8x16xf32>
    "tpu.trace_stop"() : () -> ()
    %cst_11 = arith.constant dense<0xFF800000> : vector<2x8xf32>
    %19 = vector.multi_reduction <maximumf>, %18, %cst_11 [2] : vector<2x8x16xf32> to vector<2x8xf32>
    %20 = vector.shape_cast %19 : vector<2x8xf32> to vector<2x8x1xf32>
    %21 = vector.broadcast %20 : vector<2x8x1xf32> to vector<2x8x16xf32>
    %22 = arith.subf %18, %21 : vector<2x8x16xf32>
    %23 = math.exp %22 : vector<2x8x16xf32>
    %cst_12 = arith.constant dense<0.000000e+00> : vector<2x8xf32>
    %24 = vector.multi_reduction <add>, %23, %cst_12 [2] : vector<2x8x16xf32> to vector<2x8xf32>
    %25 = vector.shape_cast %24 : vector<2x8xf32> to vector<2x8x1xf32>
    %26 = vector.broadcast %25 : vector<2x8x1xf32> to vector<2x8x16xf32>
    %27 = arith.divf %23, %26 : vector<2x8x16xf32>
    %28 = arith.truncf %27 : vector<2x8x16xf32> to vector<2x8x16xbf16>
    "tpu.trace_start"() <{level = 10 : i32, message = "bnp,bph->bnh"}> : () -> ()
    %cst_13 = arith.constant dense<0.000000e+00> : vector<2x8x32xf32>
    %29 = tpu.matmul %28, %14, %cst_13 {dimension_numbers = #tpu.dot_dimension_numbers<[2], [1], [1], [2], [0, 0, 0, 1, 1, 2], [0], [0]>} : vector<2x8x16xbf16>, vector<2x16x32xbf16>, vector<2x8x32xf32> -> vector<2x8x32xf32>
    "tpu.trace_stop"() : () -> ()
    %30 = arith.truncf %29 : vector<2x8x32xf32> to vector<2x8x32xbf16>
    %31 = vector.shape_cast %30 : vector<2x8x32xbf16> to vector<16x32xbf16>
    %c0_14 = arith.constant 0 : index
    %c0_15 = arith.constant 0 : index
    %32 = vector.load %arg6[%c0_14, %c0_15] : memref<32x32xbf16, #tpu.memory_space<vmem>>, vector<32x32xbf16>
    %cst_16 = arith.constant dense<0.000000e+00> : vector<16x32xf32>
    %33 = tpu.matmul %31, %32, %cst_16 {dimension_numbers = #tpu.dot_dimension_numbers<[1], [0], [0], [1], [0, 0, 1, 1], [], []>} : vector<16x32xbf16>, vector<32x32xbf16>, vector<16x32xf32> -> vector<16x32xf32>
    %34 = arith.truncf %33 : vector<16x32xf32> to vector<16x32xbf16>
    %c0_17 = arith.constant 0 : index
    %c0_18 = arith.constant 0 : index
    %35 = vector.load %arg7[%c0_17, %c0_18] : memref<16x32xbf16, #tpu.memory_space<vmem>>, vector<16x32xbf16>
    tpu.vector_store %arg7[%c0_17, %c0_18], %34 {strides = array<i32>} : memref<16x32xbf16, #tpu.memory_space<vmem>>, vector<16x32xbf16>,
    return
  }
  func.func @transform_0(%arg0: i32) -> (i32, i32) {
    %c0_i32 = arith.constant 0 : i32
    %c0_i32_0 = arith.constant 0 : i32
    %c0_i32_1 = arith.constant 0 : i32
    return %c0_i32, %c0_i32_0 : i32, i32
  }
  func.func @transform_1(%arg0: i32) -> (i32, i32) {
    %c0_i32 = arith.constant 0 : i32
    %c0_i32_0 = arith.constant 0 : i32
    %c0_i32_1 = arith.constant 0 : i32
    return %c0_i32, %c0_i32_0 : i32, i32
  }
  func.func @transform_2(%arg0: i32) -> (i32, i32) {
    %c0_i32 = arith.constant 0 : i32
    %c0_i32_0 = arith.constant 0 : i32
    %c0_i32_1 = arith.constant 0 : i32
    return %c0_i32, %c0_i32_0 : i32, i32
  }
  func.func @transform_3(%arg0: i32) -> (i32, i32) {
    %c0_i32 = arith.constant 0 : i32
    %c0_i32_0 = arith.constant 0 : i32
    %c0_i32_1 = arith.constant 0 : i32
    return %c0_i32, %c0_i32_0 : i32, i32
  }
  func.func @transform_4(%arg0: i32) -> (i32, i32) {
    %c0_i32 = arith.constant 0 : i32
    %c0_i32_0 = arith.constant 0 : i32
    %c0_i32_1 = arith.constant 0 : i32
    return %c0_i32, %c0_i32_0 : i32, i32
  }
  func.func @transform_5(%arg0: i32) -> (i32, i32) {
    %c0_i32 = arith.constant 0 : i32
    %c0_i32_0 = arith.constant 0 : i32
    %c0_i32_1 = arith.constant 0 : i32
    return %c0_i32, %c0_i32_0 : i32, i32
  }
  func.func @transform_6(%arg0: i32) -> (i32, i32) {
    %c0_i32 = arith.constant 0 : i32
    %c0_i32_0 = arith.constant 0 : i32
    %c0_i32_1 = arith.constant 0 : i32
    return %c0_i32, %c0_i32_0 : i32, i32
  }
}

</mosaic_0001>

<llo_original>
// kernel: tpu_custom_call.1
$region0: #{tpu_custom_call.1}
  #allocation0 [shape = 'u32[]', space=smem, size = 0x4, offset = 0x4, fixed_abs, tag = 'smem constant byte address 0x4 - core index']
  #allocation1 [shape = 'u32[144,128]{1,0:T(1,128)}', space=vmem, size = 0x12000, scoped, tag = 'internal scratch']
  %s0 = inlined_call_operand.vmem [shape: bf16[32,128], index: 0, kind: input, shape index: {}]
  %s1 = inlined_call_operand.vmem [shape: bf16[128,32], index: 1, kind: input, shape index: {}]
  %s2 = inlined_call_operand.vmem [shape: bf16[1,32], index: 2, kind: input, shape index: {}]
  %s3 = inlined_call_operand.vmem [shape: bf16[8,32], index: 3, kind: input, shape index: {}]
  %s4 = inlined_call_operand.vmem [shape: bf16[32,64], index: 4, kind: input, shape index: {}]
  %s5 = inlined_call_operand.vmem [shape: bf16[32,32], index: 5, kind: input, shape index: {}]
  %s6 = inlined_call_operand.hbm [shape: bf16[16,32], index: 6, kind: output, shape index: {}]
  %s7 = sld [smem:[#allocation0]]
  $region34: #{tpu_custom_call.1} parent=0
    _
  %s9 = ssub.s32 1, %s7
  %s10 = scalar_select 0, %s9, %s7
  $region1: #{tpu_custom_call.1} parent=0
    #allocation2 [shape = 'u8[4096]{0}', space=vmem, size = 0x1000, scoped, tag = 'output window, operand 0, single buffered']
    #allocation3 [shape = 's32[1]{0}', space=sflag, size = 0x4, scoped, tag = 'scoped memory for tpu_custom_call.1']
    %11 = vsyncpa [#allocation3], 0
    // Predicated region
    $region2: #{tpu_custom_call.1} parent=1 // pred_check
      _
    $region3: #{tpu_custom_call.1} parent=1 // pred_check_branch
      %13 = sbr.rel (0) target = $region5
    $region4: #{tpu_custom_call.1} parent=1 // pred_region
      _
    $region5: #{tpu_custom_call.1} parent=1 // pred_fallthru
      _
    // Predicated region
    $region6: #{tpu_custom_call.1} parent=1 // pred_check
      _
    $region7: #{tpu_custom_call.1} parent=1 // pred_check_branch
      %15 = sbr.rel (0) target = $region9
    $region8: #{tpu_custom_call.1} parent=1 // pred_region
      _
    $region9: #{tpu_custom_call.1} parent=1 // pred_fallthru
      _
    // Predicated region
    $region10: #{tpu_custom_call.1} parent=1 // pred_check
      _
    $region11: #{tpu_custom_call.1} parent=1 // pred_check_branch
      %17 = sbr.rel (0) target = $region13
    $region12: #{tpu_custom_call.1} parent=1 // pred_region
      _
    $region13: #{tpu_custom_call.1} parent=1 // pred_fallthru
      _
    // Predicated region
    $region14: #{tpu_custom_call.1} parent=1 // pred_check
      _
    $region15: #{tpu_custom_call.1} parent=1 // pred_check_branch
      %19 = sbr.rel (0) target = $region17
    $region16: #{tpu_custom_call.1} parent=1 // pred_region
      _
    $region17: #{tpu_custom_call.1} parent=1 // pred_fallthru
      _
    // Predicated region
    $region18: #{tpu_custom_call.1} parent=1 // pred_check
      _
    $region19: #{tpu_custom_call.1} parent=1 // pred_check_branch
      %21 = sbr.rel (0) target = $region21
    $region20: #{tpu_custom_call.1} parent=1 // pred_region
      _
    $region21: #{tpu_custom_call.1} parent=1 // pred_fallthru
      _
    // Predicated region
    $region22: #{tpu_custom_call.1} parent=1 // pred_check
      _
    $region23: #{tpu_custom_call.1} parent=1 // pred_check_branch
      %23 = sbr.rel (0) target = $region25
    $region24: #{tpu_custom_call.1} parent=1 // pred_region
      _
    $region25: #{tpu_custom_call.1} parent=1 // pred_fallthru
      _
    %v25 = vld [vmem:[%s0] sm:$0xf]
    %v26 = vld [vmem:[%s0 + $0x4] sm:$0xf]
    %v27 = vld [vmem:[%s0 + $0x8] sm:$0xf]
    %v28 = vld [vmem:[%s0 + $0xc] sm:$0xf]
    %v29 = vld [vmem:[%s1] sm:$0xf]
    %v30 = vld [vmem:[%s1 + $0x4] sm:$0xf]
    %v31 = vld [vmem:[%s1 + $0x8] sm:$0xf]
    %v32 = vld [vmem:[%s1 + $0xc] sm:$0xf]
    %v33 = vld [vmem:[%s1 + $0x10] sm:$0xf]
    %v34 = vld [vmem:[%s1 + $0x14] sm:$0xf]
    %v35 = vld [vmem:[%s1 + $0x18] sm:$0xf]
    %v36 = vld [vmem:[%s1 + $0x1c] sm:$0xf]
    %v37 = vld [vmem:[%s1 + $0x20] sm:$0xf]
    %v38 = vld [vmem:[%s1 + $0x24] sm:$0xf]
    %v39 = vld [vmem:[%s1 + $0x28] sm:$0xf]
    %v40 = vld [vmem:[%s1 + $0x2c] sm:$0xf]
    %v41 = vld [vmem:[%s1 + $0x30] sm:$0xf]
    %v42 = vld [vmem:[%s1 + $0x34] sm:$0xf]
    %v43 = vld [vmem:[%s1 + $0x38] sm:$0xf]
    %v44 = vld [vmem:[%s1 + $0x3c] sm:$0xf]
    %v45 = vld [vmem:[%s2] sm:$0x1]
    %v46 = vunpack.c.l.bf16 %v45
    %v47 = vlaneseq
    %v48 = vshrl.u32 %v47, 7
    %v49 = vsub.s32 0, %v48
    %v50 = vrot.slane %v46, %v49
    %v55 = vunpack.c.l.b16 %v25
    %v56 = vunpack.c.l.b16 %v26
    %v57 = vunpack.c.l.b16 %v27
    %v58 = vunpack.c.l.b16 %v28
    %v59 = vpack.c.b16 %v56, %v55
    %v60 = vpack.c.b16 %v58, %v57
    %v79 = vunpack.c.l.b16 %v29
    %v80 = vunpack.c.l.b16 %v30
    %v81 = vunpack.c.l.b16 %v31
    %v82 = vunpack.c.l.b16 %v32
    %v83 = vunpack.c.l.b16 %v33
    %v84 = vunpack.c.l.b16 %v34
    %v85 = vunpack.c.l.b16 %v35
    %v86 = vunpack.c.l.b16 %v36
    %v87 = vunpack.c.l.b16 %v37
    %v88 = vunpack.c.l.b16 %v38
    %v89 = vunpack.c.l.b16 %v39
    %v90 = vunpack.c.l.b16 %v40
    %v91 = vunpack.c.l.b16 %v41
    %v92 = vunpack.c.l.b16 %v42
    %v93 = vunpack.c.l.b16 %v43
    %v94 = vunpack.c.l.b16 %v44
    %v95 = vpack.c.b16 %v80, %v79
    %v96 = vpack.c.b16 %v82, %v81
    %v97 = vpack.c.b16 %v84, %v83
    %v98 = vpack.c.b16 %v86, %v85
    %v99 = vpack.c.b16 %v88, %v87
    %v100 = vpack.c.b16 %v90, %v89
    %v101 = vpack.c.b16 %v92, %v91
    %v102 = vpack.c.b16 %v94, %v93
    %111 = vmatprep.subr.bf16.mxu0 0
    %112 = vmatpush1.bf16.msra.mxu0 %v95
    %113 = vmatprep.subr.bf16.mxu0 0
    %114 = vmatpush1.bf16.msra.mxu0 %v96
    %115 = vmatprep.subr.bf16.mxu0 0
    %116 = vmatpush1.bf16.msra.mxu0 %v97
    %117 = vmatprep.subr.bf16.mxu0 0
    %118 = vmatpush1.bf16.msra.mxu0 %v98
    %119 = vmatprep.subr.bf16.mxu0 0
    %120 = vmatpush1.bf16.msra.mxu0 %v99
    %121 = vmatprep.subr.bf16.mxu0 0
    %122 = vmatpush1.bf16.msra.mxu0 %v100
    %123 = vmatprep.subr.bf16.mxu0 0
    %124 = vmatpush1.bf16.msra.mxu0 %v101
    %125 = vmatprep.subr.bf16.mxu0 0
    %126 = vmatpush1.bf16.msra.mxu0 %v102
    %127 = vmatprep.subr.bf16.mxu0 0
    %128 = vmatpush1.bf16.msra.mxu0 0
    %129 = vmatprep.subr.bf16.mxu0 0
    %130 = vmatpush1.bf16.msra.mxu0 0
    %131 = vmatprep.subr.bf16.mxu0 0
    %132 = vmatpush1.bf16.msra.mxu0 0
    %133 = vmatprep.subr.bf16.mxu0 0
    %134 = vmatpush1.bf16.msra.mxu0 0
    %135 = vmatprep.subr.bf16.mxu0 0
    %136 = vmatpush1.bf16.msra.mxu0 0
    %137 = vmatprep.subr.bf16.mxu0 0
    %138 = vmatpush1.bf16.msra.mxu0 0
    %139 = vmatprep.subr.bf16.mxu0 0
    %140 = vmatpush1.bf16.msra.mxu0 0
    %141 = vmatprep.subr.bf16.mxu0 0
    %142 = vmatpush1.bf16.msra.mxu0 0
    %143 = vmatprep.mubr.bf16.mxu0 0
    %144 = vmatmul.mubr.bf16.gmra.mrb[0].mxu0 %v59
    %v145 = vpop.f32.mrb[0].mxu0
    %v146 = vadd.f32 %v50, %v145
    %v147 = vpop.f32.mrb[0].mxu0
    %v148 = vpop.f32.mrb[0].mxu0
    %v149 = vadd.f32 %v50, %v148
    %v150 = vpop.f32.mrb[0].mxu0
    %151 = vmatprep.mubr.bf16.mxu0 0
    %152 = vmatmul.mubr.bf16.gmra.mrb[0].mxu0 %v60
    %v153 = vpop.f32.mrb[0].mxu0
    %v154 = vadd.f32 %v50, %v153
    %v155 = vpop.f32.mrb[0].mxu0
    %v156 = vpop.f32.mrb[0].mxu0
    %v157 = vadd.f32 %v50, %v156
    %v158 = vpop.f32.mrb[0].mxu0
    %159 = vdwg.mxu0
    %v160 = vpack.c.bf16 %v149, %v146
    %v161 = vpack.c.bf16 %v157, %v154
    %v162 = vld [vmem:[%s4] sm:$0xf]
    %v163 = vld [vmem:[%s4 + $0x4] sm:$0xf]
    %v164 = vld [vmem:[%s4 + $0x8] sm:$0xf]
    %v165 = vld [vmem:[%s4 + $0xc] sm:$0xf]
    %v170 = vunpack.c.l.b16 %v162
    %v171 = vunpack.c.l.b16 %v163
    %v172 = vunpack.c.l.b16 %v164
    %v173 = vunpack.c.l.b16 %v165
    %v174 = vpack.c.b16 %v171, %v170
    %v175 = vpack.c.b16 %v173, %v172
    %vm178 = vcmask 261120
    %v180 = vsel %vm178, %v160, 0
    %v183 = vsel %vm178, %v161, 0
    %185 = vmatprep.subr.bf16.mxu0 0
    %186 = vmatpush1.bf16.msra.mxu0 %v174
    %187 = vmatprep.subr.bf16.mxu0 0
    %188 = vmatpush1.bf16.msra.mxu0 %v175
    %189 = vmatprep.subr.bf16.mxu0 0
    %190 = vmatpush1.bf16.msra.mxu0 0
    %191 = vmatprep.subr.bf16.mxu0 0
    %192 = vmatpush1.bf16.msra.mxu0 0
    %193 = vmatprep.subr.bf16.mxu0 0
    %194 = vmatpush1.bf16.msra.mxu0 0
    %195 = vmatprep.subr.bf16.mxu0 0
    %196 = vmatpush1.bf16.msra.mxu0 0
    %197 = vmatprep.subr.bf16.mxu0 0
    %198 = vmatpush1.bf16.msra.mxu0 0
    %199 = vmatprep.subr.bf16.mxu0 0
    %200 = vmatpush1.bf16.msra.mxu0 0
    %201 = vmatprep.subr.bf16.mxu0 0
    %202 = vmatpush1.bf16.msra.mxu0 0
    %203 = vmatprep.subr.bf16.mxu0 0
    %204 = vmatpush1.bf16.msra.mxu0 0
    %205 = vmatprep.subr.bf16.mxu0 0
    %206 = vmatpush1.bf16.msra.mxu0 0
    %207 = vmatprep.subr.bf16.mxu0 0
    %208 = vmatpush1.bf16.msra.mxu0 0
    %209 = vmatprep.subr.bf16.mxu0 0
    %210 = vmatpush1.bf16.msra.mxu0 0
    %211 = vmatprep.subr.bf16.mxu0 0
    %212 = vmatpush1.bf16.msra.mxu0 0
    %213 = vmatprep.subr.bf16.mxu0 0
    %214 = vmatpush1.bf16.msra.mxu0 0
    %215 = vmatprep.subr.bf16.mxu0 0
    %216 = vmatpush1.bf16.msra.mxu0 0
    %217 = vmatprep.mubr.bf16.mxu0 0
    %218 = vmatmul.mubr.bf16.gmra.mrb[0].mxu0 %v180
    %v219 = vpop.f32.mrb[0].mxu0
    %v220 = vadd.f32 0.0, %v219
    %v221 = vpop.f32.mrb[0].mxu0
    %v222 = vpop.f32.mrb[0].mxu0
    %v223 = vadd.f32 0.0, %v222
    %v224 = vpop.f32.mrb[0].mxu0
    %225 = vmatprep.mubr.bf16.mxu0 0
    %226 = vmatmul.mubr.bf16.gmra.mrb[0].mxu0 %v183
    %v227 = vpop.f32.mrb[0].mxu0
    %v228 = vadd.f32 0.0, %v227
    %v229 = vpop.f32.mrb[0].mxu0
    %v230 = vpop.f32.mrb[0].mxu0
    %v231 = vadd.f32 0.0, %v230
    %v232 = vpop.f32.mrb[0].mxu0
    %233 = vdwg.mxu0
    %v234 = vpack.c.bf16 %v223, %v220
    %v235 = vpack.c.bf16 %v231, %v228
    %v236 = vld [vmem:[%s3] sm:$0xf]
    %v238 = vsel %vm178, %v236, 0
    %v241 = vsel %vm178, %v234, 0
    %243 = vmatprep.subr.bf16.mxu0 0
    %244 = vmatpush1.bf16.xpose.msra.mxu0 %v241
    %245 = vmatprep.subr.bf16.mxu0 0
    %246 = vmatpush1.bf16.xpose.msra.mxu0 0
    %247 = vmatprep.subr.bf16.mxu0 0
    %248 = vmatpush1.bf16.xpose.msra.mxu0 0
    %249 = vmatprep.subr.bf16.mxu0 0
    %250 = vmatpush1.bf16.xpose.msra.mxu0 0
    %251 = vmatprep.subr.bf16.mxu0 0
    %252 = vmatpush1.bf16.xpose.msra.mxu0 0
    %253 = vmatprep.subr.bf16.mxu0 0
    %254 = vmatpush1.bf16.xpose.msra.mxu0 0
    %255 = vmatprep.subr.bf16.mxu0 0
    %256 = vmatpush1.bf16.xpose.msra.mxu0 0
    %257 = vmatprep.subr.bf16.mxu0 0
    %258 = vmatpush1.bf16.xpose.msra.mxu0 0
    %259 = vmatprep.subr.bf16.mxu0 0
    %260 = vmatpush1.bf16.xpose.msra.mxu0 0
    %261 = vmatprep.subr.bf16.mxu0 0
    %262 = vmatpush1.bf16.xpose.msra.mxu0 0
    %263 = vmatprep.subr.bf16.mxu0 0
    %264 = vmatpush1.bf16.xpose.msra.mxu0 0
    %265 = vmatprep.subr.bf16.mxu0 0
    %266 = vmatpush1.bf16.xpose.msra.mxu0 0
    %267 = vmatprep.subr.bf16.mxu0 0
    %268 = vmatpush1.bf16.xpose.msra.mxu0 0
    %269 = vmatprep.subr.bf16.mxu0 0
    %270 = vmatpush1.bf16.xpose.msra.mxu0 0
    %271 = vmatprep.subr.bf16.mxu0 0
    %272 = vmatpush1.bf16.xpose.msra.mxu0 0
    %273 = vmatprep.subr.bf16.mxu0 0
    %274 = vmatpush1.bf16.xpose.msra.mxu0 0
    %275 = vmatprep.mubr.bf16.mxu0 0
    %276 = vmatmul.mubr.bf16.gmra.mrb[0].mxu0 %v238
    %v277 = vpop.f32.mrb[0].mxu0
    %v278 = vadd.f32 0.0, %v277
    %v279 = vpop.f32.mrb[0].mxu0
    %v280 = vpop.f32.mrb[0].mxu0
    %v281 = vpop.f32.mrb[0].mxu0
    %282 = vdwg.mxu0
    %v284 = vsel %vm178, %v235, 0
    %286 = vmatprep.subr.bf16.mxu0 0
    %287 = vmatpush1.bf16.xpose.msra.mxu0 %v284
    %288 = vmatprep.subr.bf16.mxu0 0
    %289 = vmatpush1.bf16.xpose.msra.mxu0 0
    %290 = vmatprep.subr.bf16.mxu0 0
    %291 = vmatpush1.bf16.xpose.msra.mxu0 0
    %292 = vmatprep.subr.bf16.mxu0 0
    %293 = vmatpush1.bf16.xpose.msra.mxu0 0
    %294 = vmatprep.subr.bf16.mxu0 0
    %295 = vmatpush1.bf16.xpose.msra.mxu0 0
    %296 = vmatprep.subr.bf16.mxu0 0
    %297 = vmatpush1.bf16.xpose.msra.mxu0 0
    %298 = vmatprep.subr.bf16.mxu0 0
    %299 = vmatpush1.bf16.xpose.msra.mxu0 0
    %300 = vmatprep.subr.bf16.mxu0 0
    %301 = vmatpush1.bf16.xpose.msra.mxu0 0
    %302 = vmatprep.subr.bf16.mxu0 0
    %303 = vmatpush1.bf16.xpose.msra.mxu0 0
    %304 = vmatprep.subr.bf16.mxu0 0
    %305 = vmatpush1.bf16.xpose.msra.mxu0 0
    %306 = vmatprep.subr.bf16.mxu0 0
    %307 = vmatpush1.bf16.xpose.msra.mxu0 0
    %308 = vmatprep.subr.bf16.mxu0 0
    %309 = vmatpush1.bf16.xpose.msra.mxu0 0
    %310 = vmatprep.subr.bf16.mxu0 0
    %311 = vmatpush1.bf16.xpose.msra.mxu0 0
    %312 = vmatprep.subr.bf16.mxu0 0
    %313 = vmatpush1.bf16.xpose.msra.mxu0 0
    %314 = vmatprep.subr.bf16.mxu0 0
    %315 = vmatpush1.bf16.xpose.msra.mxu0 0
    %316 = vmatprep.subr.bf16.mxu0 0
    %317 = vmatpush1.bf16.xpose.msra.mxu0 0
    %318 = vmatprep.mubr.bf16.mxu0 0
    %319 = vmatmul.mubr.bf16.gmra.mrb[0].mxu0 %v238
    %v320 = vpop.f32.mrb[0].mxu0
    %v321 = vadd.f32 0.0, %v320
    %v322 = vpop.f32.mrb[0].mxu0
    %v323 = vpop.f32.mrb[0].mxu0
    %v324 = vpop.f32.mrb[0].mxu0
    %325 = vdwg.mxu0
    %vm326 = vcmask 130048
    %v327 = vsel %vm326, %v278, -inf
    %328 = vmax.xlane.f32.xlu0 %v327
    %v329 = vpop.xlane.xlu0 %328
    %v330 = vsel %vm326, %v321, -inf
    %331 = vmax.xlane.f32.xlu0 %v330
    %v332 = vpop.xlane.xlu0 %331
    %v333 = vsub.f32 %v278, %v329
    %v334 = vsub.f32 %v321, %v332
    %v335 = vmul.f32 %v333, 1.442695
    %v336 = vpow.pop %v335
    %v337 = vmul.f32 %v334, 1.442695
    %v338 = vpow.pop %v337
    %v339 = vsel %vm326, %v336, 0.0
    %340 = vadd.xlane.f32.xlu0 %v339
    %v341 = vpop.xlane.xlu0 %340
    %v342 = vsel %vm326, %v338, 0.0
    %343 = vadd.xlane.f32.xlu0 %v342
    %v344 = vpop.xlane.xlu0 %343
    %v345 = vrcp.pop %v341
    %v346 = vmul.f32 %v336, %v345
    %v347 = vrcp.pop %v344
    %v348 = vmul.f32 %v338, %v347
    %v349 = vpack.c.bf16 %v346, %v346
    %v350 = vpack.c.bf16 %v348, %v348
    %352 = vrot.lane.b32.xlu0 %v234, 96
    %v353 = vpop.permute.xlu0 %352
    %v356 = vsel %vm326, %v349, 0
    %358 = vmatprep.subr.bf16.mxu0 0
    %359 = vmatpush1.bf16.msra.mxu0 %v353
    %360 = vmatprep.subr.bf16.mxu0 0
    %361 = vmatpush1.bf16.msra.mxu0 0
    %362 = vmatprep.subr.bf16.mxu0 0
    %363 = vmatpush1.bf16.msra.mxu0 0
    %364 = vmatprep.subr.bf16.mxu0 0
    %365 = vmatpush1.bf16.msra.mxu0 0
    %366 = vmatprep.subr.bf16.mxu0 0
    %367 = vmatpush1.bf16.msra.mxu0 0
    %368 = vmatprep.subr.bf16.mxu0 0
    %369 = vmatpush1.bf16.msra.mxu0 0
    %370 = vmatprep.subr.bf16.mxu0 0
    %371 = vmatpush1.bf16.msra.mxu0 0
    %372 = vmatprep.subr.bf16.mxu0 0
    %373 = vmatpush1.bf16.msra.mxu0 0
    %374 = vmatprep.subr.bf16.mxu0 0
    %375 = vmatpush1.bf16.msra.mxu0 0
    %376 = vmatprep.subr.bf16.mxu0 0
    %377 = vmatpush1.bf16.msra.mxu0 0
    %378 = vmatprep.subr.bf16.mxu0 0
    %379 = vmatpush1.bf16.msra.mxu0 0
    %380 = vmatprep.subr.bf16.mxu0 0
    %381 = vmatpush1.bf16.msra.mxu0 0
    %382 = vmatprep.subr.bf16.mxu0 0
    %383 = vmatpush1.bf16.msra.mxu0 0
    %384 = vmatprep.subr.bf16.mxu0 0
    %385 = vmatpush1.bf16.msra.mxu0 0
    %386 = vmatprep.subr.bf16.mxu0 0
    %387 = vmatpush1.bf16.msra.mxu0 0
    %388 = vmatprep.subr.bf16.mxu0 0
    %389 = vmatpush1.bf16.msra.mxu0 0
    %390 = vmatprep.mubr.bf16.mxu0 0
    %391 = vmatmul.mubr.bf16.gmra.mrb[0].mxu0 %v356
    %v392 = vpop.f32.mrb[0].mxu0
    %v393 = vadd.f32 0.0, %v392
    %v394 = vpop.f32.mrb[0].mxu0
    %v395 = vpop.f32.mrb[0].mxu0
    %v396 = vpop.f32.mrb[0].mxu0
    %397 = vdwg.mxu0
    %399 = vrot.lane.b32.xlu0 %v235, 96
    %v400 = vpop.permute.xlu0 %399
    %v403 = vsel %vm326, %v350, 0
    %405 = vmatprep.subr.bf16.mxu0 0
    %406 = vmatpush1.bf16.msra.mxu0 %v400
    %407 = vmatprep.subr.bf16.mxu0 0
    %408 = vmatpush1.bf16.msra.mxu0 0
    %409 = vmatprep.subr.bf16.mxu0 0
    %410 = vmatpush1.bf16.msra.mxu0 0
    %411 = vmatprep.subr.bf16.mxu0 0
    %412 = vmatpush1.bf16.msra.mxu0 0
    %413 = vmatprep.subr.bf16.mxu0 0
    %414 = vmatpush1.bf16.msra.mxu0 0
    %415 = vmatprep.subr.bf16.mxu0 0
    %416 = vmatpush1.bf16.msra.mxu0 0
    %417 = vmatprep.subr.bf16.mxu0 0
    %418 = vmatpush1.bf16.msra.mxu0 0
    %419 = vmatprep.subr.bf16.mxu0 0
    %420 = vmatpush1.bf16.msra.mxu0 0
    %421 = vmatprep.subr.bf16.mxu0 0
    %422 = vmatpush1.bf16.msra.mxu0 0
    %423 = vmatprep.subr.bf16.mxu0 0
    %424 = vmatpush1.bf16.msra.mxu0 0
    %425 = vmatprep.subr.bf16.mxu0 0
    %426 = vmatpush1.bf16.msra.mxu0 0
    %427 = vmatprep.subr.bf16.mxu0 0
    %428 = vmatpush1.bf16.msra.mxu0 0
    %429 = vmatprep.subr.bf16.mxu0 0
    %430 = vmatpush1.bf16.msra.mxu0 0
    %431 = vmatprep.subr.bf16.mxu0 0
    %432 = vmatpush1.bf16.msra.mxu0 0
    %433 = vmatprep.subr.bf16.mxu0 0
    %434 = vmatpush1.bf16.msra.mxu0 0
    %435 = vmatprep.subr.bf16.mxu0 0
    %436 = vmatpush1.bf16.msra.mxu0 0
    %437 = vmatprep.mubr.bf16.mxu0 0
    %438 = vmatmul.mubr.bf16.gmra.mrb[0].mxu0 %v403
    %v439 = vpop.f32.mrb[0].mxu0
    %v440 = vadd.f32 0.0, %v439
    %v441 = vpop.f32.mrb[0].mxu0
    %v442 = vpop.f32.mrb[0].mxu0
    %v443 = vpop.f32.mrb[0].mxu0
    %444 = vdwg.mxu0
    %v445 = vpack.c.bf16 %v393, %v393
    %v446 = vpack.c.bf16 %v440, %v440
    %v447 = vld [vmem:[%s5] sm:$0xf]
    %v448 = vld [vmem:[%s5 + $0x4] sm:$0xf]
    %v449 = vld [vmem:[%s5 + $0x8] sm:$0xf]
    %v450 = vld [vmem:[%s5 + $0xc] sm:$0xf]
    %v453 = vunpack.c.l.b16 %v445
    %v454 = vunpack.c.l.b16 %v446
    %v455 = vpack.c.b16 %v454, %v453
    %v460 = vunpack.c.l.b16 %v447
    %v461 = vunpack.c.l.b16 %v448
    %v462 = vunpack.c.l.b16 %v449
    %v463 = vunpack.c.l.b16 %v450
    %v464 = vpack.c.b16 %v461, %v460
    %v465 = vpack.c.b16 %v463, %v462
    %v469 = vsel %vm178, %v455, 0
    %471 = vmatprep.subr.bf16.mxu0 0
    %472 = vmatpush1.bf16.msra.mxu0 %v464
    %473 = vmatprep.subr.bf16.mxu0 0
    %474 = vmatpush1.bf16.msra.mxu0 %v465
    %475 = vmatprep.subr.bf16.mxu0 0
    %476 = vmatpush1.bf16.msra.mxu0 0
    %477 = vmatprep.subr.bf16.mxu0 0
    %478 = vmatpush1.bf16.msra.mxu0 0
    %479 = vmatprep.subr.bf16.mxu0 0
    %480 = vmatpush1.bf16.msra.mxu0 0
    %481 = vmatprep.subr.bf16.mxu0 0
    %482 = vmatpush1.bf16.msra.mxu0 0
    %483 = vmatprep.subr.bf16.mxu0 0
    %484 = vmatpush1.bf16.msra.mxu0 0
    %485 = vmatprep.subr.bf16.mxu0 0
    %486 = vmatpush1.bf16.msra.mxu0 0
    %487 = vmatprep.subr.bf16.mxu0 0
    %488 = vmatpush1.bf16.msra.mxu0 0
    %489 = vmatprep.subr.bf16.mxu0 0
    %490 = vmatpush1.bf16.msra.mxu0 0
    %491 = vmatprep.subr.bf16.mxu0 0
    %492 = vmatpush1.bf16.msra.mxu0 0
    %493 = vmatprep.subr.bf16.mxu0 0
    %494 = vmatpush1.bf16.msra.mxu0 0
    %495 = vmatprep.subr.bf16.mxu0 0
    %496 = vmatpush1.bf16.msra.mxu0 0
    %497 = vmatprep.subr.bf16.mxu0 0
    %498 = vmatpush1.bf16.msra.mxu0 0
    %499 = vmatprep.subr.bf16.mxu0 0
    %500 = vmatpush1.bf16.msra.mxu0 0
    %501 = vmatprep.subr.bf16.mxu0 0
    %502 = vmatpush1.bf16.msra.mxu0 0
    %503 = vmatprep.mubr.bf16.mxu0 0
    %504 = vmatmul.mubr.bf16.gmra.mrb[0].mxu0 %v469
    %v505 = vpop.f32.mrb[0].mxu0
    %v506 = vadd.f32 0.0, %v505
    %v507 = vpop.f32.mrb[0].mxu0
    %v508 = vpop.f32.mrb[0].mxu0
    %v509 = vadd.f32 0.0, %v508
    %v510 = vpop.f32.mrb[0].mxu0
    %511 = vdwg.mxu0
    %v512 = vpack.c.bf16 %v509, %v506
    %v514 = vunpack.c.l.b16 %v512
    %v515 = vunpack.c.h.b16 %v512
    %v516 = vpack.c.b16 %v514, %v514
    %v517 = vpack.c.b16 %v515, %v515
    %vm520 = vcmask 257024
    %521 = vst.msk [vmem:[#allocation2] sm:$0xf] %vm520, %v516
    %522 = vst.msk [vmem:[#allocation2 + $0x4] sm:$0xf] %vm520, %v517
    // Predicated region
    $region26: #{tpu_custom_call.1} parent=1 // pred_check
      _
    $region27: #{tpu_custom_call.1} parent=1 // pred_check_branch
      %524 = sbr.rel (0) target = $region29
    $region28: #{tpu_custom_call.1} parent=1 // pred_region
      %s526 = ssub.s32 128, 128
      %527 = vsyncadd [#allocation3], %s526
      %s528 = sshll.u32 [#allocation2], 4
      %s529 = int_to_ptr.vmem [resolvable:$true] %s528
      %534 = dma.vmem_to_hbm [thread:$0]  %s529, 128, %s6, [#allocation3], 64, 64, 4
    $region29: #{tpu_custom_call.1} parent=1 // pred_fallthru
      _
    // Predicated region
    $region30: #{tpu_custom_call.1} parent=1 // pred_check
      _
    $region31: #{tpu_custom_call.1} parent=1 // pred_check_branch
      %536 = sbr.rel (0) target = $region33
    $region32: #{tpu_custom_call.1} parent=1 // pred_region
      %537 = dma.done [#allocation3], 128
    $region33: #{tpu_custom_call.1} parent=1 // pred_fallthru
      _
    %538 = vsyncpa [#allocation3], 1

</llo_original>
